<compile_context>
chip_gen: v7x
topology: tpu7x:2x2x1
jax: 0.10.0
libtpu: 0.0.40
codegen_flags: <defaults>
</compile_context>

<pallas_src>
import jax
import jax.numpy as jnp
from jax.experimental import pallas as pl
from jax.experimental.pallas import tpu as pltpu


_PALLAS_MIN_ROWS = 128          # below this, plain XLA fusion wins
_ROW_TILE_CAP = 512             # rows per tile cap (safe on v7x's 64 MiB VMEM)
_VMEM_BUDGET = 40 << 20         # conservative working-set budget for tiling


def _round_up(n, m):
    return ((n + m - 1) // m) * m


def _pick_row_tile(n_rows, cap=_ROW_TILE_CAP):
    """Balanced row tile: multiple of 8, <= cap, >= 2 grid steps when possible."""
    if n_rows <= 8:
        return 8
    n_tiles = max(2, pl.cdiv(n_rows, cap))          # >=2 so v7x megacore has work
    return min(cap, _round_up(pl.cdiv(n_rows, n_tiles), 8))


def _pick_col_tile(E, H, TN, in_bytes, out_bytes, budget=_VMEM_BUDGET):
    """Largest H-tile whose double-buffered working set fits the VMEM budget."""
    def fits(th):
        need = (2 * E * th * in_bytes        # W_attr block
                + 2 * TN * E * in_bytes      # x block
                + 2 * TN * th * out_bytes    # out block
                + 4 * th * 4)                # b_attr + temp_enc blocks (f32)
        return need <= budget

    if fits(H):
        return H
    th = max(128, (H // 128) * 128)          # non-full H tile must be 128-aligned
    while th > 128 and not fits(th):
        th -= 128
    return th


def _tdm_kernel(x_ref, wa_ref, ba_ref, temp_ref, o_ref):
    # attr = relu(x @ Wa + ba); out = attr + temp_enc (temp_enc already relu'd).
    attr = jnp.dot(x_ref[...], wa_ref[...], preferred_element_type=jnp.float32)
    attr = jnp.maximum(attr + ba_ref[...], 0.0)          # (TN, TH) + (1, TH)
    o_ref[...] = (attr + temp_ref[...]).astype(o_ref.dtype)


def _temporal_basis(timestamp, num_bases):
    """(1, 2B) temporal basis — tiny scalar work, stays in JAX glue."""
    t = jnp.asarray(timestamp, dtype=jnp.float32)
    i = jnp.arange(num_bases, dtype=jnp.float32)
    sin_part = jnp.sin(t / (10000.0 ** (2.0 * i / num_bases)))
    # exact PyTorch precedence: exponent is 2*i + (1/num_bases)
    cos_part = jnp.cos(t / (10000.0 ** (2.0 * i + 1.0 / num_bases)))
    return jnp.stack([sin_part, cos_part], axis=1).reshape(1, 2 * num_bases)


def temporal_dependency_forward(x, timestamp, params, *, out_dtype=None,
                                force_pallas=False):
    """x: (N, E); timestamp: scalar. Returns (N, H) in out_dtype (default x.dtype)."""
    wa = params["W_attr"]        # (E, H)  (transposed vs. torch's (H, E))
    ba = params["b_attr"]        # (1, H)  f32
    wt = params["W_temp"]        # (2B, H)
    bt = params["b_temp"]        # (1, H)
    num_bases = wt.shape[0] // 2

    N, E = x.shape
    H = wa.shape[1]
    out_dtype = jnp.dtype(out_dtype) if out_dtype is not None else x.dtype

    # Constant-per-call temporal encoding, hoisted out of the kernel
    # (saves 3 input DMAs + one degenerate 1-row MXU matmul per call).
    feat = _temporal_basis(timestamp, num_bases)                       # (1, 2B)
    temp_enc = jnp.maximum(feat @ wt.astype(jnp.float32) + bt, 0.0)    # (1, H) f32
    temp_enc = temp_enc.astype(jnp.float32)

    if wa.dtype != x.dtype:
        # For a bf16-x path pre-cast W_attr once outside the training step;
        # this per-call cast only runs when dtypes are mismatched.
        wa = wa.astype(x.dtype)

    if not force_pallas and N < _PALLAS_MIN_ROWS:
        # Tiny batches: fixed pallas_call / DMA setup overhead exceeds the op.
        attr = jnp.maximum(
            jnp.dot(x, wa, preferred_element_type=jnp.float32) + ba, 0.0)
        return (attr + temp_enc).astype(out_dtype)

    in_bytes = jnp.dtype(x.dtype).itemsize
    out_bytes = out_dtype.itemsize

    TN = _pick_row_tile(N)
    if in_bytes < 4:
        TN = _round_up(TN, 16)               # bf16 packs 16 sublanes per vreg
    TH = _pick_col_tile(E, H, TN, in_bytes, out_bytes)

    grid = (pl.cdiv(N, TN), pl.cdiv(H, TH))  # ragged edge blocks are write-masked

    working_set = (2 * TN * E * in_bytes + 2 * E * TH * in_bytes
                   + 2 * TN * TH * out_bytes + 4 * TH * 4)
    vmem_limit = int(min(56 << 20, max(2 * working_set, 8 << 20)))

    cost = pl.CostEstimate(
        flops=2 * N * E * H,
        transcendentals=0,
        bytes_accessed=(N * E * in_bytes + E * H * in_bytes
                        + N * H * out_bytes + 2 * H * 4),
    )

    return pl.pallas_call(
        _tdm_kernel,
        out_shape=jax.ShapeDtypeStruct((N, H), out_dtype),
        grid=grid,
        in_specs=[
            pl.BlockSpec((TN, E), lambda i, j: (i, 0)),   # x: streamed over rows
            pl.BlockSpec((E, TH), lambda i, j: (0, j)),   # W_attr: resident per H-tile
            pl.BlockSpec((1, TH), lambda i, j: (0, j)),   # b_attr
            pl.BlockSpec((1, TH), lambda i, j: (0, j)),   # temp_enc
        ],
        out_specs=pl.BlockSpec((TN, TH), lambda i, j: (i, j)),
        compiler_params=pltpu.CompilerParams(
            dimension_semantics=("parallel", "parallel"),
            vmem_limit_bytes=vmem_limit,
        ),
        cost_estimate=cost,
    )(x, wa, ba, temp_enc)


def init_params(key, embedding_size, hidden_size, num_temporal_bases):
    k1, k2, k3, k4 = jax.random.split(key, 4)
    W_attr = jax.random.normal(k1, (embedding_size, hidden_size), jnp.float32) * 0.1
    b_attr = jax.random.normal(k2, (1, hidden_size), jnp.float32) * 0.1
    W_temp = jax.random.normal(k3, (2 * num_temporal_bases, hidden_size), jnp.float32) * 0.1
    b_temp = jax.random.normal(k4, (1, hidden_size), jnp.float32) * 0.1
    return {"W_attr": W_attr, "b_attr": b_attr, "W_temp": W_temp, "b_temp": b_temp}


def _reference(x, timestamp, params):
    num_bases = params["W_temp"].shape[0] // 2
    feat = _temporal_basis(timestamp, num_bases)
    attr = jnp.maximum(x.astype(jnp.float32) @ params["W_attr"] + params["b_attr"], 0.0)
    temp = jnp.maximum(feat @ params["W_temp"] + params["b_temp"], 0.0)
    return attr + temp


if __name__ == "__main__":
    embedding_size = 16
    hidden_size = 32
    num_temporal_bases = 4

    key = jax.random.PRNGKey(0)
    kx1, kx2, kx3, kp = jax.random.split(key, 4)
    params = init_params(kp, embedding_size, hidden_size, num_temporal_bases)
    timestamp = jnp.float32(123.0)

    # Case 1: N multiple of 8, single tile, f32 in/out.
    N1 = 8
    x1 = jax.random.normal(kx1, (N1, embedding_size), jnp.float32)
    out1 = jax.block_until_ready(
        temporal_dependency_forward(x1, timestamp, params, force_pallas=True))
    ref1 = _reference(x1, timestamp, params)
    assert out1.shape == (N1, hidden_size) and out1.dtype == jnp.float32
    assert jnp.allclose(out1, ref1, atol=1e-5), "f32 single-tile mismatch"

    # Case 2: N not a multiple of 8 -> ragged last row-block (masked writeback,
    # no wrapper pad / slice), 2 grid steps.
    N2 = 10
    x2 = jax.random.normal(kx2, (N2, embedding_size), jnp.float32)
    out2 = jax.block_until_ready(
        temporal_dependency_forward(x2, timestamp, params, force_pallas=True))
    ref2 = _reference(x2, timestamp, params)
    assert out2.shape == (N2, hidden_size)
    assert jnp.allclose(out2, ref2, atol=1e-5), "ragged-block mismatch"

    # Case 3: larger N (balanced 2-tile grid) with bf16 writeback.
    N3 = 300
    x3 = jax.random.normal(kx3, (N3, embedding_size), jnp.float32)
    out3 = jax.block_until_ready(
        temporal_dependency_forward(x3, timestamp, params,
                                    out_dtype=jnp.bfloat16, force_pallas=True))
    ref3 = _reference(x3, timestamp, params)
    assert out3.shape == (N3, hidden_size) and out3.dtype == jnp.bfloat16
    assert jnp.allclose(out3.astype(jnp.float32), ref3, atol=5e-2, rtol=2e-2), \
        "bf16-writeback mismatch"

    # Case 4: bf16 input path (x already bf16 upstream; f32 MXU accumulation).
    x4 = x1.astype(jnp.bfloat16)
    out4 = jax.block_until_ready(
        temporal_dependency_forward(x4, timestamp, params, force_pallas=True))
    ref4 = _reference(x4, timestamp, params)   # reference uses the same bf16 x
    assert out4.dtype == jnp.bfloat16
    assert jnp.allclose(out4.astype(jnp.float32), ref4, atol=5e-2, rtol=2e-2), \
        "bf16-input mismatch"

    # Case 5: tiny-N dispatch path (no force) -> plain XLA expression.
    out5 = jax.block_until_ready(temporal_dependency_forward(x1, timestamp, params))
    assert jnp.allclose(out5, ref1, atol=1e-5), "XLA-dispatch mismatch"

    print("KERNEL_OK")
</pallas_src>

<mosaic_0001>
module attributes {stable_mosaic.version = 11 : i64} {
  func.func @_tdm_kernel(%arg0: i32, %arg1: i32, %arg2: memref<8x16xf32, #tpu.memory_space<vmem>>, %arg3: memref<16x32xf32, #tpu.memory_space<vmem>>, %arg4: memref<1x32xf32, #tpu.memory_space<vmem>>, %arg5: memref<1x32xf32, #tpu.memory_space<vmem>>, %arg6: memref<8x32xf32, #tpu.memory_space<vmem>>) attributes {dimension_semantics = [#tpu.dimension_semantics<parallel>, #tpu.dimension_semantics<parallel>], iteration_bounds = array<i64: 1, 1>, scalar_prefetch = 0 : i64, scratch_operands = 0 : i64, tpu.core_type = #tpu.core_type<tc>, window_params = [{transform_indices = @transform_0, window_bounds = array<i64: 8, 16>}, {transform_indices = @transform_1, window_bounds = array<i64: 16, 32>}, {transform_indices = @transform_2, window_bounds = array<i64: 1, 32>}, {transform_indices = @transform_3, window_bounds = array<i64: 1, 32>}, {transform_indices = @transform_4, window_bounds = array<i64: 8, 32>}]} {
    %c0 = arith.constant 0 : index
    %c0_0 = arith.constant 0 : index
    %0 = vector.load %arg2[%c0, %c0_0] : memref<8x16xf32, #tpu.memory_space<vmem>>, vector<8x16xf32>
    %c0_1 = arith.constant 0 : index
    %c0_2 = arith.constant 0 : index
    %1 = vector.load %arg3[%c0_1, %c0_2] : memref<16x32xf32, #tpu.memory_space<vmem>>, vector<16x32xf32>
    %cst = arith.constant dense<0.000000e+00> : vector<8x32xf32>
    %2 = tpu.matmul %0, %1, %cst {dimension_numbers = #tpu.dot_dimension_numbers<[1], [0], [0], [1], [0, 0, 1, 1], [], []>} : vector<8x16xf32>, vector<16x32xf32>, vector<8x32xf32> -> vector<8x32xf32>
    %c0_3 = arith.constant 0 : index
    %c0_4 = arith.constant 0 : index
    %3 = vector.load %arg4[%c0_3, %c0_4] : memref<1x32xf32, #tpu.memory_space<vmem>>, vector<1x32xf32>
    %4 = vector.broadcast %3 : vector<1x32xf32> to vector<8x32xf32>
    %5 = arith.addf %2, %4 : vector<8x32xf32>
    %cst_5 = arith.constant 0.000000e+00 : f32
    %6 = vector.broadcast %cst_5 : f32 to vector<8x32xf32>
    %7 = arith.maximumf %5, %6 : vector<8x32xf32>
    %c0_6 = arith.constant 0 : index
    %c0_7 = arith.constant 0 : index
    %8 = vector.load %arg5[%c0_6, %c0_7] : memref<1x32xf32, #tpu.memory_space<vmem>>, vector<1x32xf32>
    %9 = vector.broadcast %8 : vector<1x32xf32> to vector<8x32xf32>
    %10 = arith.addf %7, %9 : vector<8x32xf32>
    %c0_8 = arith.constant 0 : index
    %c0_9 = arith.constant 0 : index
    %11 = vector.load %arg6[%c0_8, %c0_9] : memref<8x32xf32, #tpu.memory_space<vmem>>, vector<8x32xf32>
    tpu.vector_store %arg6[%c0_8, %c0_9], %10 {strides = array<i32>} : memref<8x32xf32, #tpu.memory_space<vmem>>, vector<8x32xf32>,
    return
  }
  func.func @transform_0(%arg0: i32, %arg1: i32) -> (i32, i32) {
    %c0_i32 = arith.constant 0 : i32
    %c0_i32_0 = arith.constant 0 : i32
    return %arg0, %c0_i32 : i32, i32
  }
  func.func @transform_1(%arg0: i32, %arg1: i32) -> (i32, i32) {
    %c0_i32 = arith.constant 0 : i32
    %c0_i32_0 = arith.constant 0 : i32
    return %c0_i32, %arg1 : i32, i32
  }
  func.func @transform_2(%arg0: i32, %arg1: i32) -> (i32, i32) {
    %c0_i32 = arith.constant 0 : i32
    %c0_i32_0 = arith.constant 0 : i32
    return %c0_i32, %arg1 : i32, i32
  }
  func.func @transform_3(%arg0: i32, %arg1: i32) -> (i32, i32) {
    %c0_i32 = arith.constant 0 : i32
    %c0_i32_0 = arith.constant 0 : i32
    return %c0_i32, %arg1 : i32, i32
  }
  func.func @transform_4(%arg0: i32, %arg1: i32) -> (i32, i32) {
    %c0_i32 = arith.constant 0 : i32
    return %arg0, %arg1 : i32, i32
  }
}

</mosaic_0001>

<llo_original>
// kernel: tpu_custom_call.1
$region0: #{tpu_custom_call.1}
  #allocation0 [shape = 'u32[]', space=smem, size = 0x4, offset = 0x4, fixed_abs, tag = 'smem constant byte address 0x4 - core index']
  #allocation1 [shape = 'u32[144,128]{1,0:T(1,128)}', space=vmem, size = 0x12000, scoped, tag = 'internal scratch']
  %s0 = inlined_call_operand.hbm [shape: f32[8,16], index: 0, kind: input, shape index: {}]
  %s1 = inlined_call_operand.hbm [shape: f32[16,32], index: 1, kind: input, shape index: {}]
  %s2 = inlined_call_operand.vmem [shape: f32[1,32], index: 2, kind: input, shape index: {}]
  %s3 = inlined_call_operand.vmem [shape: f32[1,32], index: 3, kind: input, shape index: {}]
  %s4 = inlined_call_operand.hbm [shape: f32[8,32], index: 4, kind: output, shape index: {}]
  %s5 = sld [smem:[#allocation0]]
  $region34: #{tpu_custom_call.1} parent=0
    _
  %s7 = ssub.s32 1, %s5
  %s8 = scalar_select 0, %s7, %s5
  $region1: #{tpu_custom_call.1} parent=0
    #allocation2 [shape = 'u8[4096]{0}', space=vmem, size = 0x1000, scoped, tag = 'input window, operand 0, single buffered']
    #allocation3 [shape = 's32[1]{0}', space=sflag, size = 0x4, scoped, tag = 'scoped memory for tpu_custom_call.1']
    #allocation4 [shape = 's32[1]{0}', space=sflag, size = 0x4, scoped, tag = 'scoped memory for tpu_custom_call.1']
    #allocation5 [shape = 'u8[8192]{0}', space=vmem, size = 0x2000, scoped, tag = 'input window, operand 1, single buffered']
    #allocation6 [shape = 's32[1]{0}', space=sflag, size = 0x4, scoped, tag = 'scoped memory for tpu_custom_call.1']
    #allocation7 [shape = 'u8[4096]{0}', space=vmem, size = 0x1000, scoped, tag = 'output window, operand 0, single buffered']
    %9 = vsyncpa [#allocation3], 0
    %10 = vsyncpa [#allocation6], 0
    %11 = vsyncpa [#allocation4], 0
    // Predicated region
    $region2: #{tpu_custom_call.1} parent=1 // pred_check
      _
    $region3: #{tpu_custom_call.1} parent=1 // pred_check_branch
      %13 = sbr.rel (0) target = $region5
    $region4: #{tpu_custom_call.1} parent=1 // pred_region
      %s15 = ssub.s32 128, 128
      %16 = vsyncadd [#allocation3], %s15
      %s18 = sshll.u32 [#allocation2], 4
      %s19 = int_to_ptr.vmem [resolvable:$true] %s18
      %21 = dma.hbm_to_vmem [thread:$0]  %s0, 128, %s19, [#allocation3]
    $region5: #{tpu_custom_call.1} parent=1 // pred_fallthru
      _
    // Predicated region
    $region6: #{tpu_custom_call.1} parent=1 // pred_check
      _
    $region7: #{tpu_custom_call.1} parent=1 // pred_check_branch
      %23 = sbr.rel (0) target = $region9
    $region8: #{tpu_custom_call.1} parent=1 // pred_region
      %s25 = ssub.s32 256, 256
      %26 = vsyncadd [#allocation6], %s25
      %s27 = sshll.u32 [#allocation5], 4
      %s28 = int_to_ptr.vmem [resolvable:$true] %s27
      %33 = dma.hbm_to_vmem [thread:$0]  %s1, 256, %s28, [#allocation6], 128, 128, 8
    $region9: #{tpu_custom_call.1} parent=1 // pred_fallthru
      _
    // Predicated region
    $region10: #{tpu_custom_call.1} parent=1 // pred_check
      _
    $region11: #{tpu_custom_call.1} parent=1 // pred_check_branch
      %35 = sbr.rel (0) target = $region13
    $region12: #{tpu_custom_call.1} parent=1 // pred_region
      _
    $region13: #{tpu_custom_call.1} parent=1 // pred_fallthru
      _
    // Predicated region
    $region14: #{tpu_custom_call.1} parent=1 // pred_check
      _
    $region15: #{tpu_custom_call.1} parent=1 // pred_check_branch
      %37 = sbr.rel (0) target = $region17
    $region16: #{tpu_custom_call.1} parent=1 // pred_region
      _
    $region17: #{tpu_custom_call.1} parent=1 // pred_fallthru
      _
    // Predicated region
    $region18: #{tpu_custom_call.1} parent=1 // pred_check
      _
    $region19: #{tpu_custom_call.1} parent=1 // pred_check_branch
      %39 = sbr.rel (0) target = $region21
    $region20: #{tpu_custom_call.1} parent=1 // pred_region
      %40 = dma.done [#allocation3], 128
    $region21: #{tpu_custom_call.1} parent=1 // pred_fallthru
      _
    // Predicated region
    $region22: #{tpu_custom_call.1} parent=1 // pred_check
      _
    $region23: #{tpu_custom_call.1} parent=1 // pred_check_branch
      %42 = sbr.rel (0) target = $region25
    $region24: #{tpu_custom_call.1} parent=1 // pred_region
      %43 = dma.done [#allocation6], 256
    $region25: #{tpu_custom_call.1} parent=1 // pred_fallthru
      _
    %v44 = vld [vmem:[#allocation2] sm:$0xff]
    %v45 = vld [vmem:[#allocation5] sm:$0xff]
    %v46 = vld [vmem:[#allocation5 + $0x8] sm:$0xff]
    %v47 = vld [vmem:[%s2] sm:$0x1]
    %v49 = vlaneseq
    %v50 = vshrl.u32 %v49, 7
    %v51 = vsub.s32 0, %v50
    %v52 = vrot.slane %v47, %v51
    %vm54 = vcmask 130048
    %v56 = vsel %vm54, %v44, 0
    %58 = vmatprep.subr.mxu0 0.0
    %59 = vmatpush1.msra.mxu0 %v45
    %60 = vmatprep.subr.mxu0 0.0
    %61 = vmatpush1.msra.mxu0 %v46
    %62 = vmatprep.subr.mxu0 0.0
    %63 = vmatpush1.msra.mxu0 0.0
    %64 = vmatprep.subr.mxu0 0.0
    %65 = vmatpush1.msra.mxu0 0.0
    %66 = vmatprep.subr.mxu0 0.0
    %67 = vmatpush1.msra.mxu0 0.0
    %68 = vmatprep.subr.mxu0 0.0
    %69 = vmatpush1.msra.mxu0 0.0
    %70 = vmatprep.subr.mxu0 0.0
    %71 = vmatpush1.msra.mxu0 0.0
    %72 = vmatprep.subr.mxu0 0.0
    %73 = vmatpush1.msra.mxu0 0.0
    %74 = vmatprep.subr.mxu0 0.0
    %75 = vmatpush1.msra.mxu0 0.0
    %76 = vmatprep.subr.mxu0 0.0
    %77 = vmatpush1.msra.mxu0 0.0
    %78 = vmatprep.subr.mxu0 0.0
    %79 = vmatpush1.msra.mxu0 0.0
    %80 = vmatprep.subr.mxu0 0.0
    %81 = vmatpush1.msra.mxu0 0.0
    %82 = vmatprep.subr.mxu0 0.0
    %83 = vmatpush1.msra.mxu0 0.0
    %84 = vmatprep.subr.mxu0 0.0
    %85 = vmatpush1.msra.mxu0 0.0
    %86 = vmatprep.subr.mxu0 0.0
    %87 = vmatpush1.msra.mxu0 0.0
    %88 = vmatprep.subr.mxu0 0.0
    %89 = vmatpush1.msra.mxu0 0.0
    %90 = vmatprep.subr.mxu0 0.0
    %91 = vmatpush1.msra.mxu0 0.0
    %92 = vmatprep.subr.mxu0 0.0
    %93 = vmatpush1.msra.mxu0 0.0
    %94 = vmatprep.subr.mxu0 0.0
    %95 = vmatpush1.msra.mxu0 0.0
    %96 = vmatprep.subr.mxu0 0.0
    %97 = vmatpush1.msra.mxu0 0.0
    %98 = vmatprep.subr.mxu0 0.0
    %99 = vmatpush1.msra.mxu0 0.0
    %100 = vmatprep.subr.mxu0 0.0
    %101 = vmatpush1.msra.mxu0 0.0
    %102 = vmatprep.subr.mxu0 0.0
    %103 = vmatpush1.msra.mxu0 0.0
    %104 = vmatprep.subr.mxu0 0.0
    %105 = vmatpush1.msra.mxu0 0.0
    %106 = vmatprep.subr.mxu0 0.0
    %107 = vmatpush1.msra.mxu0 0.0
    %108 = vmatprep.subr.mxu0 0.0
    %109 = vmatpush1.msra.mxu0 0.0
    %110 = vmatprep.subr.mxu0 0.0
    %111 = vmatpush1.msra.mxu0 0.0
    %112 = vmatprep.subr.mxu0 0.0
    %113 = vmatpush1.msra.mxu0 0.0
    %114 = vmatprep.subr.mxu0 0.0
    %115 = vmatpush1.msra.mxu0 0.0
    %116 = vmatprep.subr.mxu0 0.0
    %117 = vmatpush1.msra.mxu0 0.0
    %118 = vmatprep.subr.mxu0 0.0
    %119 = vmatpush1.msra.mxu0 0.0
    %120 = vmatprep.subr.mxu0 0.0
    %121 = vmatpush1.msra.mxu0 0.0
    %122 = vmatprep.mubr.f32.mxu0 0.0
    %123 = vmatmul.mubr.f32.gmra.mrb[0].mxu0 %v56
    %v124 = vpop.f32.mrb[0].mxu0
    %v125 = vadd.f32 %v52, %v124
    %v126 = vpop.f32.mrb[0].mxu0
    %127 = vdwg.mxu0
    %v128 = vmax.f32 %v125, 0.0
    %v129 = vld [vmem:[%s3] sm:$0x1]
    %v131 = vlaneseq
    %v132 = vshrl.u32 %v131, 7
    %v133 = vsub.s32 0, %v132
    %v134 = vrot.slane %v129, %v133
    %v136 = vadd.f32 %v128, %v134
    %vm137 = vcmask 261120
    %138 = vst.msk [vmem:[#allocation7] sm:$0xff] %vm137, %v136
    // Predicated region
    $region26: #{tpu_custom_call.1} parent=1 // pred_check
      _
    $region27: #{tpu_custom_call.1} parent=1 // pred_check_branch
      %140 = sbr.rel (0) target = $region29
    $region28: #{tpu_custom_call.1} parent=1 // pred_region
      %s142 = ssub.s32 128, 128
      %143 = vsyncadd [#allocation4], %s142
      %s145 = sshll.u32 [#allocation7], 4
      %s146 = int_to_ptr.vmem [resolvable:$true] %s145
      %148 = dma.vmem_to_hbm [thread:$0]  %s146, 128, %s4, [#allocation4]
    $region29: #{tpu_custom_call.1} parent=1 // pred_fallthru
      _
    // Predicated region
    $region30: #{tpu_custom_call.1} parent=1 // pred_check
      _
    $region31: #{tpu_custom_call.1} parent=1 // pred_check_branch
      %150 = sbr.rel (0) target = $region33
    $region32: #{tpu_custom_call.1} parent=1 // pred_region
      %151 = dma.done [#allocation4], 128
    $region33: #{tpu_custom_call.1} parent=1 // pred_fallthru
      _
    %152 = vsyncpa [#allocation3], 1
    %153 = vsyncpa [#allocation6], 1
    %154 = vsyncpa [#allocation4], 1

</llo_original>
